<compile_context>
chip_gen: v7x
topology: tpu7x:2x2x1
jax: 0.10.0
libtpu: 0.0.40
codegen_flags: <defaults>
</compile_context>

<pallas_src>
import functools

import jax
import jax.numpy as jnp
from jax.experimental import pallas as pl
from jax.experimental.pallas import tpu as pltpu


def _round_up(n, m):
    return ((n + m - 1) // m) * m


def _feat_align():
    """MXU-friendly feature alignment: 128 on <=v5 (128x128 MXUs), 256 on v6e/v7x."""
    try:
        kind = jax.devices()[0].device_kind.lower()
    except Exception:
        return 256
    for old in ("v2", "v3", "v4", "v5"):
        if old in kind:
            return 128
    return 256


def _vmem_capacity_bytes():
    try:
        info = pltpu.get_tpu_info()
        cap = getattr(info, "vmem_capacity_bytes", None)
        if cap:
            return int(cap)
    except Exception:
        pass
    return 64 * 1024 * 1024  # conservative default: v7x per-TensorCore VMEM


def _sublane_pack(dtype):
    return {1: 32, 2: 16, 4: 8}.get(jnp.dtype(dtype).itemsize, 8)


def prepare_params(w1, b1, w2, b2, *, feat_align=None):
    """One-time layout/padding prep (hoisted out of the per-call hot path).

    Expects weights in [in, out] layout (transpose of PyTorch's [out, in]) and
    biases as [1, features]. Pads every feature axis up to `feat_align` so the
    kernel's loads/stores are lane-dense and MXU tiles are full.
    """
    assert jnp.issubdtype(w1.dtype, jnp.floating), "v7x MXU has no integer path"
    if feat_align is None:
        feat_align = _feat_align()
    d_in, h = w1.shape
    h2, d_out = w2.shape
    assert h == h2
    dip = _round_up(d_in, feat_align)
    hp = _round_up(h, feat_align)
    dop = _round_up(d_out, feat_align)
    return dict(
        w1=jnp.pad(w1, ((0, dip - d_in), (0, hp - h))),
        b1=jnp.pad(b1.reshape(1, -1), ((0, 0), (0, hp - h))),
        w2=jnp.pad(w2, ((0, hp - h), (0, dop - d_out))),
        b2=jnp.pad(b2.reshape(1, -1), ((0, 0), (0, dop - d_out))),
        d_in=d_in,
        d_out=d_out,
        feat_align=feat_align,
    )


def _mlp_kernel(x_ref, w1_ref, b1_ref, w2_ref, b2_ref, o_ref, acc_ref, *, mxu_dtype):
    k = pl.program_id(1)

    @pl.when(k == 0)
    def _():
        acc_ref[...] = jnp.zeros_like(acc_ref)

    x = x_ref[...]
    w1 = w1_ref[...]
    w2 = w2_ref[...]
    if mxu_dtype is not None:
        x = x.astype(mxu_dtype)
        w1 = w1.astype(mxu_dtype)
        w2 = w2.astype(mxu_dtype)

    # fc1 panel + bias + ReLU (VPU work hides under the MXU), f32 accumulation.
    h = jnp.dot(x, w1, preferred_element_type=jnp.float32)
    h = jnp.maximum(h + b1_ref[...].astype(jnp.float32), 0.0)
    if w2.dtype != jnp.float32:
        h = h.astype(w2.dtype)
    # fc2 partial product for this hidden panel, accumulated in f32 scratch.
    acc_ref[...] += jnp.dot(h, w2, preferred_element_type=jnp.float32)

    @pl.when(k == pl.num_programs(1) - 1)
    def _():
        o_ref[...] = (acc_ref[...] + b2_ref[...].astype(jnp.float32)).astype(o_ref.dtype)


def simple_mlp_forward(x, params, *, batch_tile=512, mxu_dtype=None,
                       weight_resident_bytes=24 * 1024 * 1024):
    """Fused MLP forward: relu(x @ w1 + b1) @ w2 + b2.

    x: [B, D_in]; params from prepare_params(). Returns [B, D_out].
    """
    w1, b1, w2, b2 = params["w1"], params["b1"], params["w2"], params["b2"]
    d_out = params["d_out"]
    feat_align = params["feat_align"]

    B, d_in = x.shape
    assert d_in == params["d_in"]
    dip, hp = w1.shape
    dop = w2.shape[1]

    x_itemsize = jnp.dtype(x.dtype).itemsize
    w_itemsize = jnp.dtype(w1.dtype).itemsize

    # ---- batch tiling: big tiles amortize per-step overhead; keep >=2 tiles
    # for mid-size batches so v7x's two TensorCores both get work. -----------
    sub = _sublane_pack(x.dtype)
    if B >= batch_tile:
        TB = batch_tile
    elif 2 * B >= batch_tile:
        TB = _round_up(-(-B // 2), sub)  # ~two tiles
    else:
        TB = _round_up(B, sub)
    Bp = _round_up(B, TB)
    num_b = Bp // TB

    # ---- hidden (reduction) tiling: keep w1/w2 resident when they fit,
    # otherwise stream hidden-dim panels with an f32 accumulator. ------------
    resident_bytes = w_itemsize * (dip * hp + hp * dop)
    if resident_bytes <= weight_resident_bytes:
        TH = hp
    else:
        per_h_bytes = 2 * w_itemsize * (dip + dop)  # double-buffered panels
        TH = max(feat_align,
                 (weight_resident_bytes // per_h_bytes) // feat_align * feat_align)
        TH = min(TH, hp)
    hp_g = _round_up(hp, TH)
    if hp_g != hp:  # extra zero-padding so TH divides the hidden axis (exact math)
        w1 = jnp.pad(w1, ((0, 0), (0, hp_g - hp)))
        b1 = jnp.pad(b1, ((0, 0), (0, hp_g - hp)))
        w2 = jnp.pad(w2, ((0, hp_g - hp), (0, 0)))
        hp = hp_g
    num_h = hp // TH

    # Only the activations are padded per call; weights were prepared once.
    xp = jnp.pad(x, ((0, Bp - B), (0, dip - d_in)))

    # ---- VMEM budget: count each operand by its actual buffer count. -------
    wbuf = 1 if num_h == 1 else 2
    acc_bytes = 4 * TB * dop
    h_bytes = 4 * TB * TH
    if mxu_dtype is not None:
        h_bytes += jnp.dtype(mxu_dtype).itemsize * TB * TH
    est_vmem = (2 * TB * dip * x_itemsize               # streamed x tiles
                + wbuf * (dip * TH + TH) * w_itemsize   # w1 + b1 panels
                + wbuf * TH * dop * w_itemsize          # w2 panels
                + dop * w_itemsize                      # b2 (resident)
                + 2 * TB * dop * x_itemsize             # streamed out tiles
                + acc_bytes + h_bytes)                  # f32 scratch + intermediate
    vmem_cap = _vmem_capacity_bytes()
    vmem_limit = int(min(max(int(1.5 * est_vmem) + (2 << 20), 8 << 20),
                         int(0.75 * vmem_cap)))

    cost = pl.CostEstimate(
        flops=2 * Bp * hp * (dip + dop),
        transcendentals=0,
        bytes_accessed=(x_itemsize * (Bp * dip + Bp * dop)
                        + w_itemsize * (dip * hp + hp * dop + hp + dop)),
    )

    kernel = functools.partial(_mlp_kernel, mxu_dtype=mxu_dtype)

    def _call(single_buffer_resident):
        const_kw = ({"pipeline_mode": pl.Buffered(1)} if single_buffer_resident else {})
        # Hidden-panel operands are only constant-index when num_h == 1.
        w_kw = const_kw if num_h == 1 else {}
        in_specs = [
            pl.BlockSpec((TB, dip), lambda i, k: (i, 0)),            # x: tiled batch
            pl.BlockSpec((dip, TH), lambda i, k: (0, k), **w_kw),    # w1 panel
            pl.BlockSpec((1, TH), lambda i, k: (0, k), **w_kw),      # b1 panel
            pl.BlockSpec((TH, dop), lambda i, k: (k, 0), **w_kw),    # w2 panel
            pl.BlockSpec((1, dop), lambda i, k: (0, 0), **const_kw), # b2 resident
        ]
        out_specs = pl.BlockSpec((TB, dop), lambda i, k: (i, 0))
        return pl.pallas_call(
            kernel,
            out_shape=jax.ShapeDtypeStruct((Bp, dop), x.dtype),
            grid=(num_b, num_h),
            in_specs=in_specs,
            out_specs=out_specs,
            scratch_shapes=[pltpu.VMEM((TB, dop), jnp.float32)],
            compiler_params=pltpu.CompilerParams(
                dimension_semantics=("parallel", "arbitrary"),
                vmem_limit_bytes=vmem_limit,
            ),
            cost_estimate=cost,
        )(xp, w1, b1, w2, b2)

    try:
        out_padded = _call(True)
    except Exception:
        # Fallback if this jax build rejects single-buffered (Buffered(1)) specs.
        out_padded = _call(False)

    return out_padded[:B, :d_out]


def init_params(key, input_dim, hidden_dim, output_dim, dtype=jnp.float32):
    """nn.Linear-style init U(-1/sqrt(fan_in), 1/sqrt(fan_in)), [in,out] layout."""
    k1, k2, k3, k4 = jax.random.split(key, 4)
    bound1 = 1.0 / (input_dim ** 0.5)
    bound2 = 1.0 / (hidden_dim ** 0.5)
    w1 = jax.random.uniform(k1, (input_dim, hidden_dim), dtype, -bound1, bound1)
    b1 = jax.random.uniform(k2, (1, hidden_dim), dtype, -bound1, bound1)
    w2 = jax.random.uniform(k3, (hidden_dim, output_dim), dtype, -bound2, bound2)
    b2 = jax.random.uniform(k4, (1, output_dim), dtype, -bound2, bound2)
    return w1, b1, w2, b2


def _reference(x, w1, b1, w2, b2):
    return jnp.maximum(x @ w1 + b1, 0.0) @ w2 + b2


if __name__ == "__main__":
    key = jax.random.PRNGKey(0)
    k1, k2, k3, k4 = jax.random.split(key, 4)

    # Tolerance is loose enough to cover the MXU's bf16-input default precision
    # for f32 matmuls (values here are O(1)).
    TOL = 2e-2

    # --- case 1: tiny shapes, fully-resident weights, single grid column ----
    batch, input_dim, hidden_dim, output_dim = 8, 16, 32, 8
    x = jax.random.normal(k1, (batch, input_dim), dtype=jnp.float32)
    w1, b1, w2, b2 = init_params(k2, input_dim, hidden_dim, output_dim)
    params = prepare_params(w1, b1, w2, b2)          # one-time padding / layout prep
    out = jax.block_until_ready(simple_mlp_forward(x, params))
    ref = _reference(x, w1, b1, w2, b2)
    assert out.shape == (batch, output_dim)
    assert jnp.allclose(out, ref, atol=TOL, rtol=TOL), float(jnp.max(jnp.abs(out - ref)))

    # --- case 2: exercise the multi-batch-tile + hidden-panel accumulator path
    batch2, input_dim2, hidden_dim2, output_dim2 = 300, 16, 512, 24
    x2 = jax.random.normal(k3, (batch2, input_dim2), dtype=jnp.float32)
    w1b, b1b, w2b, b2b = init_params(k4, input_dim2, hidden_dim2, output_dim2)
    params2 = prepare_params(w1b, b1b, w2b, b2b)
    out2 = jax.block_until_ready(
        simple_mlp_forward(x2, params2, weight_resident_bytes=512 * 1024))
    ref2 = _reference(x2, w1b, b1b, w2b, b2b)
    assert out2.shape == (batch2, output_dim2)
    assert jnp.allclose(out2, ref2, atol=TOL, rtol=TOL), float(jnp.max(jnp.abs(out2 - ref2)))

    print("KERNEL_OK")
</pallas_src>

<mosaic_0001>
module attributes {stable_mosaic.version = 11 : i64} {
  func.func @_mlp_kernel(%arg0: i32, %arg1: i32, %arg2: memref<8x256xf32, #tpu.memory_space<vmem>>, %arg3: memref<256x256xf32, #tpu.memory_space<vmem>>, %arg4: memref<1x256xf32, #tpu.memory_space<vmem>>, %arg5: memref<256x256xf32, #tpu.memory_space<vmem>>, %arg6: memref<1x256xf32, #tpu.memory_space<vmem>>, %arg7: memref<8x256xf32, #tpu.memory_space<vmem>>, %arg8: memref<8x256xf32, #tpu.memory_space<vmem>>) attributes {dimension_semantics = [#tpu.dimension_semantics<parallel>, #tpu.dimension_semantics<arbitrary>], iteration_bounds = array<i64: 1, 1>, scalar_prefetch = 0 : i64, scratch_operands = 1 : i64, tpu.core_type = #tpu.core_type<tc>, window_params = [{transform_indices = @transform_0, window_bounds = array<i64: 8, 256>}, {pipeline_mode = #tpu.pipeline_mode<synchronous>, transform_indices = @transform_1, window_bounds = array<i64: 256, 256>}, {pipeline_mode = #tpu.pipeline_mode<synchronous>, transform_indices = @transform_2, window_bounds = array<i64: 1, 256>}, {pipeline_mode = #tpu.pipeline_mode<synchronous>, transform_indices = @transform_3, window_bounds = array<i64: 256, 256>}, {pipeline_mode = #tpu.pipeline_mode<synchronous>, transform_indices = @transform_4, window_bounds = array<i64: 1, 256>}, {transform_indices = @transform_5, window_bounds = array<i64: 8, 256>}]} {
    %c0_i32 = arith.constant 0 : i32
    %0 = arith.cmpi eq, %arg1, %c0_i32 : i32
    %1 = arith.extui %0 : i1 to i32
    %c0_i32_0 = arith.constant 0 : i32
    %2 = arith.cmpi ne, %1, %c0_i32_0 : i32
    scf.if %2 {
      %cst_16 = arith.constant 0.000000e+00 : f32
      %19 = vector.broadcast %cst_16 : f32 to vector<8x256xf32>
      %c0_17 = arith.constant 0 : index
      %c0_18 = arith.constant 0 : index
      %20 = vector.load %arg8[%c0_17, %c0_18] : memref<8x256xf32, #tpu.memory_space<vmem>>, vector<8x256xf32>
      tpu.vector_store %arg8[%c0_17, %c0_18], %19 {strides = array<i32>} : memref<8x256xf32, #tpu.memory_space<vmem>>, vector<8x256xf32>,
    } else {
    }
    %c0 = arith.constant 0 : index
    %c0_1 = arith.constant 0 : index
    %3 = vector.load %arg2[%c0, %c0_1] : memref<8x256xf32, #tpu.memory_space<vmem>>, vector<8x256xf32>
    %c0_2 = arith.constant 0 : index
    %c0_3 = arith.constant 0 : index
    %4 = vector.load %arg3[%c0_2, %c0_3] : memref<256x256xf32, #tpu.memory_space<vmem>>, vector<256x256xf32>
    %c0_4 = arith.constant 0 : index
    %c0_5 = arith.constant 0 : index
    %5 = vector.load %arg5[%c0_4, %c0_5] : memref<256x256xf32, #tpu.memory_space<vmem>>, vector<256x256xf32>
    %cst = arith.constant dense<0.000000e+00> : vector<8x256xf32>
    %6 = tpu.matmul %3, %4, %cst {dimension_numbers = #tpu.dot_dimension_numbers<[1], [0], [0], [1], [0, 0, 1, 1], [], []>} : vector<8x256xf32>, vector<256x256xf32>, vector<8x256xf32> -> vector<8x256xf32>
    %c0_6 = arith.constant 0 : index
    %c0_7 = arith.constant 0 : index
    %7 = vector.load %arg4[%c0_6, %c0_7] : memref<1x256xf32, #tpu.memory_space<vmem>>, vector<1x256xf32>
    %8 = vector.broadcast %7 : vector<1x256xf32> to vector<8x256xf32>
    %9 = arith.addf %6, %8 : vector<8x256xf32>
    %cst_8 = arith.constant 0.000000e+00 : f32
    %10 = vector.broadcast %cst_8 : f32 to vector<8x256xf32>
    %11 = arith.maximumf %9, %10 : vector<8x256xf32>
    %c0_9 = arith.constant 0 : index
    %c0_10 = arith.constant 0 : index
    %12 = vector.load %arg8[%c0_9, %c0_10] : memref<8x256xf32, #tpu.memory_space<vmem>>, vector<8x256xf32>
    %cst_11 = arith.constant dense<0.000000e+00> : vector<8x256xf32>
    %13 = tpu.matmul %11, %5, %cst_11 {dimension_numbers = #tpu.dot_dimension_numbers<[1], [0], [0], [1], [0, 0, 1, 1], [], []>} : vector<8x256xf32>, vector<256x256xf32>, vector<8x256xf32> -> vector<8x256xf32>
    %14 = arith.addf %12, %13 : vector<8x256xf32>
    %c0_12 = arith.constant 0 : index
    %c0_13 = arith.constant 0 : index
    %15 = vector.load %arg8[%c0_12, %c0_13] : memref<8x256xf32, #tpu.memory_space<vmem>>, vector<8x256xf32>
    tpu.vector_store %arg8[%c0_12, %c0_13], %14 {strides = array<i32>} : memref<8x256xf32, #tpu.memory_space<vmem>>, vector<8x256xf32>,
    %c0_i32_14 = arith.constant 0 : i32
    %16 = arith.cmpi eq, %arg1, %c0_i32_14 : i32
    %17 = arith.extui %16 : i1 to i32
    %c0_i32_15 = arith.constant 0 : i32
    %18 = arith.cmpi ne, %17, %c0_i32_15 : i32
    scf.if %18 {
      %c0_16 = arith.constant 0 : index
      %c0_17 = arith.constant 0 : index
      %19 = vector.load %arg8[%c0_16, %c0_17] : memref<8x256xf32, #tpu.memory_space<vmem>>, vector<8x256xf32>
      %c0_18 = arith.constant 0 : index
      %c0_19 = arith.constant 0 : index
      %20 = vector.load %arg6[%c0_18, %c0_19] : memref<1x256xf32, #tpu.memory_space<vmem>>, vector<1x256xf32>
      %21 = vector.broadcast %20 : vector<1x256xf32> to vector<8x256xf32>
      %22 = arith.addf %19, %21 : vector<8x256xf32>
      %c0_20 = arith.constant 0 : index
      %c0_21 = arith.constant 0 : index
      %23 = vector.load %arg7[%c0_20, %c0_21] : memref<8x256xf32, #tpu.memory_space<vmem>>, vector<8x256xf32>
      tpu.vector_store %arg7[%c0_20, %c0_21], %22 {strides = array<i32>} : memref<8x256xf32, #tpu.memory_space<vmem>>, vector<8x256xf32>,
    } else {
    }
    return
  }
  func.func @transform_0(%arg0: i32, %arg1: i32) -> (i32, i32) {
    %c0_i32 = arith.constant 0 : i32
    %c0_i32_0 = arith.constant 0 : i32
    return %arg0, %c0_i32 : i32, i32
  }
  func.func @transform_1(%arg0: i32, %arg1: i32) -> (i32, i32) {
    %c0_i32 = arith.constant 0 : i32
    %c0_i32_0 = arith.constant 0 : i32
    return %c0_i32, %arg1 : i32, i32
  }
  func.func @transform_2(%arg0: i32, %arg1: i32) -> (i32, i32) {
    %c0_i32 = arith.constant 0 : i32
    %c0_i32_0 = arith.constant 0 : i32
    return %c0_i32, %arg1 : i32, i32
  }
  func.func @transform_3(%arg0: i32, %arg1: i32) -> (i32, i32) {
    %c0_i32 = arith.constant 0 : i32
    %c0_i32_0 = arith.constant 0 : i32
    return %arg1, %c0_i32 : i32, i32
  }
  func.func @transform_4(%arg0: i32, %arg1: i32) -> (i32, i32) {
    %c0_i32 = arith.constant 0 : i32
    %c0_i32_0 = arith.constant 0 : i32
    %c0_i32_1 = arith.constant 0 : i32
    return %c0_i32, %c0_i32_0 : i32, i32
  }
  func.func @transform_5(%arg0: i32, %arg1: i32) -> (i32, i32) {
    %c0_i32 = arith.constant 0 : i32
    %c0_i32_0 = arith.constant 0 : i32
    return %arg0, %c0_i32 : i32, i32
  }
}

module attributes {stable_mosaic.version = 11 : i64} {
  func.func @_mlp_kernel(%arg0: i32, %arg1: i32, %arg2: memref<8x256xf32, #tpu.memory_space<vmem>>, %arg3: memref<256x256xf32, #tpu.memory_space<vmem>>, %arg4: memref<1x256xf32, #tpu.memory_space<vmem>>, %arg5: memref<256x256xf32, #tpu.memory_space<vmem>>, %arg6: memref<1x256xf32, #tpu.memory_space<vmem>>, %arg7: memref<8x256xf32, #tpu.memory_space<vmem>>, %arg8: memref<8x256xf32, #tpu.memory_space<vmem>>) attributes {dimension_semantics = [#tpu.dimension_semantics<parallel>, #tpu.dimension_semantics<arbitrary>], iteration_bounds = array<i64: 1, 1>, scalar_prefetch = 0 : i64, scratch_operands = 1 : i64, tpu.core_type = #tpu.core_type<tc>, window_params = [{transform_indices = @transform_0, window_bounds = array<i64: 8, 256>}, {transform_indices = @transform_1, window_bounds = array<i64: 256, 256>}, {transform_indices = @transform_2, window_bounds = array<i64: 1, 256>}, {transform_indices = @transform_3, window_bounds = array<i64: 256, 256>}, {pipeline_mode = #tpu.pipeline_mode<synchronous>, transform_indices = @transform_4, window_bounds = array<i64: 1, 256>}, {transform_indices = @transform_5, window_bounds = array<i64: 8, 256>}]} {
    %c0_i32 = arith.constant 0 : i32
    %0 = arith.cmpi eq, %arg1, %c0_i32 : i32
    %1 = arith.extui %0 : i1 to i32
    %c0_i32_0 = arith.constant 0 : i32
    %2 = arith.cmpi ne, %1, %c0_i32_0 : i32
    scf.if %2 {
      %cst_16 = arith.constant 0.000000e+00 : f32
      %19 = vector.broadcast %cst_16 : f32 to vector<8x256xf32>
      %c0_17 = arith.constant 0 : index
      %c0_18 = arith.constant 0 : index
      %20 = vector.load %arg8[%c0_17, %c0_18] : memref<8x256xf32, #tpu.memory_space<vmem>>, vector<8x256xf32>
      tpu.vector_store %arg8[%c0_17, %c0_18], %19 {strides = array<i32>} : memref<8x256xf32, #tpu.memory_space<vmem>>, vector<8x256xf32>,
    } else {
    }
    %c0 = arith.constant 0 : index
    %c0_1 = arith.constant 0 : index
    %3 = vector.load %arg2[%c0, %c0_1] : memref<8x256xf32, #tpu.memory_space<vmem>>, vector<8x256xf32>
    %c0_2 = arith.constant 0 : index
    %c0_3 = arith.constant 0 : index
    %4 = vector.load %arg3[%c0_2, %c0_3] : memref<256x256xf32, #tpu.memory_space<vmem>>, vector<256x256xf32>
    %c0_4 = arith.constant 0 : index
    %c0_5 = arith.constant 0 : index
    %5 = vector.load %arg5[%c0_4, %c0_5] : memref<256x256xf32, #tpu.memory_space<vmem>>, vector<256x256xf32>
    %cst = arith.constant dense<0.000000e+00> : vector<8x256xf32>
    %6 = tpu.matmul %3, %4, %cst {dimension_numbers = #tpu.dot_dimension_numbers<[1], [0], [0], [1], [0, 0, 1, 1], [], []>} : vector<8x256xf32>, vector<256x256xf32>, vector<8x256xf32> -> vector<8x256xf32>
    %c0_6 = arith.constant 0 : index
    %c0_7 = arith.constant 0 : index
    %7 = vector.load %arg4[%c0_6, %c0_7] : memref<1x256xf32, #tpu.memory_space<vmem>>, vector<1x256xf32>
    %8 = vector.broadcast %7 : vector<1x256xf32> to vector<8x256xf32>
    %9 = arith.addf %6, %8 : vector<8x256xf32>
    %cst_8 = arith.constant 0.000000e+00 : f32
    %10 = vector.broadcast %cst_8 : f32 to vector<8x256xf32>
    %11 = arith.maximumf %9, %10 : vector<8x256xf32>
    %c0_9 = arith.constant 0 : index
    %c0_10 = arith.constant 0 : index
    %12 = vector.load %arg8[%c0_9, %c0_10] : memref<8x256xf32, #tpu.memory_space<vmem>>, vector<8x256xf32>
    %cst_11 = arith.constant dense<0.000000e+00> : vector<8x256xf32>
    %13 = tpu.matmul %11, %5, %cst_11 {dimension_numbers = #tpu.dot_dimension_numbers<[1], [0], [0], [1], [0, 0, 1, 1], [], []>} : vector<8x256xf32>, vector<256x256xf32>, vector<8x256xf32> -> vector<8x256xf32>
    %14 = arith.addf %12, %13 : vector<8x256xf32>
    %c0_12 = arith.constant 0 : index
    %c0_13 = arith.constant 0 : index
    %15 = vector.load %arg8[%c0_12, %c0_13] : memref<8x256xf32, #tpu.memory_space<vmem>>, vector<8x256xf32>
    tpu.vector_store %arg8[%c0_12, %c0_13], %14 {strides = array<i32>} : memref<8x256xf32, #tpu.memory_space<vmem>>, vector<8x256xf32>,
    %c0_i32_14 = arith.constant 0 : i32
    %16 = arith.cmpi eq, %arg1, %c0_i32_14 : i32
    %17 = arith.extui %16 : i1 to i32
    %c0_i32_15 = arith.constant 0 : i32
    %18 = arith.cmpi ne, %17, %c0_i32_15 : i32
    scf.if %18 {
      %c0_16 = arith.constant 0 : index
      %c0_17 = arith.constant 0 : index
      %19 = vector.load %arg8[%c0_16, %c0_17] : memref<8x256xf32, #tpu.memory_space<vmem>>, vector<8x256xf32>
      %c0_18 = arith.constant 0 : index
      %c0_19 = arith.constant 0 : index
      %20 = vector.load %arg6[%c0_18, %c0_19] : memref<1x256xf32, #tpu.memory_space<vmem>>, vector<1x256xf32>
      %21 = vector.broadcast %20 : vector<1x256xf32> to vector<8x256xf32>
      %22 = arith.addf %19, %21 : vector<8x256xf32>
      %c0_20 = arith.constant 0 : index
      %c0_21 = arith.constant 0 : index
      %23 = vector.load %arg7[%c0_20, %c0_21] : memref<8x256xf32, #tpu.memory_space<vmem>>, vector<8x256xf32>
      tpu.vector_store %arg7[%c0_20, %c0_21], %22 {strides = array<i32>} : memref<8x256xf32, #tpu.memory_space<vmem>>, vector<8x256xf32>,
    } else {
    }
    return
  }
  func.func @transform_0(%arg0: i32, %arg1: i32) -> (i32, i32) {
    %c0_i32 = arith.constant 0 : i32
    %c0_i32_0 = arith.constant 0 : i32
    return %arg0, %c0_i32 : i32, i32
  }
  func.func @transform_1(%arg0: i32, %arg1: i32) -> (i32, i32) {
    %c0_i32 = arith.constant 0 : i32
    %c0_i32_0 = arith.constant 0 : i32
    return %c0_i32, %arg1 : i32, i32
  }
  func.func @transform_2(%arg0: i32, %arg1: i32) -> (i32, i32) {
    %c0_i32 = arith.constant 0 : i32
    %c0_i32_0 = arith.constant 0 : i32
    return %c0_i32, %arg1 : i32, i32
  }
  func.func @transform_3(%arg0: i32, %arg1: i32) -> (i32, i32) {
    %c0_i32 = arith.constant 0 : i32
    %c0_i32_0 = arith.constant 0 : i32
    return %arg1, %c0_i32 : i32, i32
  }
  func.func @transform_4(%arg0: i32, %arg1: i32) -> (i32, i32) {
    %c0_i32 = arith.constant 0 : i32
    %c0_i32_0 = arith.constant 0 : i32
    %c0_i32_1 = arith.constant 0 : i32
    return %c0_i32, %c0_i32_0 : i32, i32
  }
  func.func @transform_5(%arg0: i32, %arg1: i32) -> (i32, i32) {
    %c0_i32 = arith.constant 0 : i32
    %c0_i32_0 = arith.constant 0 : i32
    return %arg0, %c0_i32 : i32, i32
  }
}

</mosaic_0001>

<llo_original>
// kernel: tpu_custom_call.1
$region0: #{tpu_custom_call.1}
  #allocation0 [shape = 'u32[]', space=smem, size = 0x4, offset = 0x4, fixed_abs, tag = 'smem constant byte address 0x4 - core index']
  #allocation1 [shape = 'u32[144,128]{1,0:T(1,128)}', space=vmem, size = 0x12000, scoped, tag = 'internal scratch']
  #allocation2 [shape = 'f32[8,256]{1,0:T(8,128)}', space=vmem, size = 0x2000, scoped, tag = 'scratch operand']
  %s0 = inlined_call_operand.hbm [shape: f32[8,256], index: 0, kind: input, shape index: {}]
  %s1 = inlined_call_operand.hbm [shape: f32[256,256], index: 1, kind: input, shape index: {}]
  %s2 = inlined_call_operand.vmem [shape: f32[1,256], index: 2, kind: input, shape index: {}]
  %s3 = inlined_call_operand.hbm [shape: f32[256,256], index: 3, kind: input, shape index: {}]
  %s4 = inlined_call_operand.vmem [shape: f32[1,256], index: 4, kind: input, shape index: {}]
  %s5 = inlined_call_operand.hbm [shape: f32[8,256], index: 5, kind: output, shape index: {}]
  %s6 = sld [smem:[#allocation0]]
  $region50: #{tpu_custom_call.1} parent=0
    _
  %s8 = ssub.s32 1, %s6
  %s9 = scalar_select 0, %s8, %s6
  $region1: #{tpu_custom_call.1} parent=0
    #allocation3 [shape = 'u8[8192]{0}', space=vmem, size = 0x2000, scoped, tag = 'input window, operand 0, single buffered']
    #allocation4 [shape = 's32[1]{0}', space=sflag, size = 0x4, scoped, tag = 'scoped memory for tpu_custom_call.1']
    #allocation5 [shape = 's32[1]{0}', space=sflag, size = 0x4, scoped, tag = 'scoped memory for tpu_custom_call.1']
    #allocation6 [shape = 'u8[262144]{0}', space=vmem, size = 0x40000, scoped, tag = 'input window, operand 1, single buffered']
    #allocation7 [shape = 's32[1]{0}', space=sflag, size = 0x4, scoped, tag = 'scoped memory for tpu_custom_call.1']
    #allocation8 [shape = 'u8[262144]{0}', space=vmem, size = 0x40000, scoped, tag = 'input window, operand 3, single buffered']
    #allocation9 [shape = 'u8[8192]{0}', space=vmem, size = 0x2000, scoped, tag = 'output window, operand 0, single buffered']
    %10 = vsyncpa [#allocation4], 0
    %11 = vsyncpa [#allocation7], 0
    %12 = vsyncpa [#allocation5], 0
    // Predicated region
    $region2: #{tpu_custom_call.1} parent=1 // pred_check
      _
    $region3: #{tpu_custom_call.1} parent=1 // pred_check_branch
      %14 = sbr.rel (0) target = $region5
    $region4: #{tpu_custom_call.1} parent=1 // pred_region
      %s16 = ssub.s32 256, 256
      %17 = vsyncadd [#allocation4], %s16
      %s19 = sshll.u32 [#allocation3], 4
      %s20 = int_to_ptr.vmem [resolvable:$true] %s19
      %22 = dma.hbm_to_vmem [thread:$0]  %s0, 256, %s20, [#allocation4]
    $region5: #{tpu_custom_call.1} parent=1 // pred_fallthru
      _
    // Predicated region
    $region6: #{tpu_custom_call.1} parent=1 // pred_check
      _
    $region7: #{tpu_custom_call.1} parent=1 // pred_check_branch
      %24 = sbr.rel (0) target = $region9
    $region8: #{tpu_custom_call.1} parent=1 // pred_region
      %s26 = ssub.s32 8192, 8192
      %27 = vsyncadd [#allocation7], %s26
      %s28 = sshll.u32 [#allocation6], 4
      %s29 = int_to_ptr.vmem [resolvable:$true] %s28
      %34 = dma.hbm_to_vmem [thread:$0]  %s1, 8192, %s29, [#allocation7], 256, 256, 16
    $region9: #{tpu_custom_call.1} parent=1 // pred_fallthru
      _
    // Predicated region
    $region10: #{tpu_custom_call.1} parent=1 // pred_check
      _
    $region11: #{tpu_custom_call.1} parent=1 // pred_check_branch
      %36 = sbr.rel (0) target = $region13
    $region12: #{tpu_custom_call.1} parent=1 // pred_region
      _
    $region13: #{tpu_custom_call.1} parent=1 // pred_fallthru
      _
    // Predicated region
    $region14: #{tpu_custom_call.1} parent=1 // pred_check
      _
    $region15: #{tpu_custom_call.1} parent=1 // pred_check_branch
      %38 = sbr.rel (0) target = $region17
    $region16: #{tpu_custom_call.1} parent=1 // pred_region
      %s40 = ssub.s32 8192, 8192
      %41 = vsyncadd [#allocation7], %s40
      %s42 = sshll.u32 [#allocation8], 4
      %s43 = int_to_ptr.vmem [resolvable:$true] %s42
      %48 = dma.hbm_to_vmem [thread:$0]  %s3, 8192, %s43, [#allocation7], 256, 256, 16
    $region17: #{tpu_custom_call.1} parent=1 // pred_fallthru
      _
    // Predicated region
    $region18: #{tpu_custom_call.1} parent=1 // pred_check
      _
    $region19: #{tpu_custom_call.1} parent=1 // pred_check_branch
      %50 = sbr.rel (0) target = $region21
    $region20: #{tpu_custom_call.1} parent=1 // pred_region
      _
    $region21: #{tpu_custom_call.1} parent=1 // pred_fallthru
      _
    // Predicated region
    $region22: #{tpu_custom_call.1} parent=1 // pred_check
      _
    $region23: #{tpu_custom_call.1} parent=1 // pred_check_branch
      %52 = sbr.rel (0) target = $region25
    $region24: #{tpu_custom_call.1} parent=1 // pred_region
      %53 = dma.done [#allocation4], 256
    $region25: #{tpu_custom_call.1} parent=1 // pred_fallthru
      _
    // Predicated region
    $region26: #{tpu_custom_call.1} parent=1 // pred_check
      _
    $region27: #{tpu_custom_call.1} parent=1 // pred_check_branch
      %55 = sbr.rel (0) target = $region29
    $region28: #{tpu_custom_call.1} parent=1 // pred_region
      %56 = dma.done [#allocation7], 8192
    $region29: #{tpu_custom_call.1} parent=1 // pred_fallthru
      _
    // Predicated region
    $region30: #{tpu_custom_call.1} parent=1 // pred_check
      _
    $region31: #{tpu_custom_call.1} parent=1 // pred_check_branch
      %58 = sbr.rel (0) target = $region33
    $region32: #{tpu_custom_call.1} parent=1 // pred_region
      %59 = dma.done [#allocation7], 8192
    $region33: #{tpu_custom_call.1} parent=1 // pred_fallthru
      _
    %p60 = scmp.eq.s32.totalorder 0, 0
    // Predicated region
    $region34: #{tpu_custom_call.1} parent=1 // pred_check
      %p61 = pneg %p60
    $region35: #{tpu_custom_call.1} parent=1 // pred_check_branch
      %63 = sbr.rel (%p61) target = $region37
    $region36: #{tpu_custom_call.1} parent=1 // pred_region
      %64 = vst [vmem:[#allocation2] sm:$0xff] 0.0
      %65 = vst [vmem:[#allocation2 + $0x8] sm:$0xff] 0.0
    $region37: #{tpu_custom_call.1} parent=1 // pred_fallthru
      _
    %v66 = vld [vmem:[#allocation3] sm:$0xff]
    %v67 = vld [vmem:[#allocation3 + $0x8] sm:$0xff]
    %v68 = vld [vmem:[#allocation6] sm:$0xff]
    %v69 = vld [vmem:[#allocation6 + $0x8] sm:$0xff]
    %v70 = vld [vmem:[#allocation6 + $0x10] sm:$0xff]
    %v71 = vld [vmem:[#allocation6 + $0x18] sm:$0xff]
    %v72 = vld [vmem:[#allocation6 + $0x20] sm:$0xff]
    %v73 = vld [vmem:[#allocation6 + $0x28] sm:$0xff]
    %v74 = vld [vmem:[#allocation6 + $0x30] sm:$0xff]
    %v75 = vld [vmem:[#allocation6 + $0x38] sm:$0xff]
    %v76 = vld [vmem:[#allocation6 + $0x40] sm:$0xff]
    %v77 = vld [vmem:[#allocation6 + $0x48] sm:$0xff]
    %v78 = vld [vmem:[#allocation6 + $0x50] sm:$0xff]
    %v79 = vld [vmem:[#allocation6 + $0x58] sm:$0xff]
    %v80 = vld [vmem:[#allocation6 + $0x60] sm:$0xff]
    %v81 = vld [vmem:[#allocation6 + $0x68] sm:$0xff]
    %v82 = vld [vmem:[#allocation6 + $0x70] sm:$0xff]
    %v83 = vld [vmem:[#allocation6 + $0x78] sm:$0xff]
    %v84 = vld [vmem:[#allocation6 + $0x80] sm:$0xff]
    %v85 = vld [vmem:[#allocation6 + $0x88] sm:$0xff]
    %v86 = vld [vmem:[#allocation6 + $0x90] sm:$0xff]
    %v87 = vld [vmem:[#allocation6 + $0x98] sm:$0xff]
    %v88 = vld [vmem:[#allocation6 + $0xa0] sm:$0xff]
    %v89 = vld [vmem:[#allocation6 + $0xa8] sm:$0xff]
    %v90 = vld [vmem:[#allocation6 + $0xb0] sm:$0xff]
    %v91 = vld [vmem:[#allocation6 + $0xb8] sm:$0xff]
    %v92 = vld [vmem:[#allocation6 + $0xc0] sm:$0xff]
    %v93 = vld [vmem:[#allocation6 + $0xc8] sm:$0xff]
    %v94 = vld [vmem:[#allocation6 + $0xd0] sm:$0xff]
    %v95 = vld [vmem:[#allocation6 + $0xd8] sm:$0xff]
    %v96 = vld [vmem:[#allocation6 + $0xe0] sm:$0xff]
    %v97 = vld [vmem:[#allocation6 + $0xe8] sm:$0xff]
    %v98 = vld [vmem:[#allocation6 + $0xf0] sm:$0xff]
    %v99 = vld [vmem:[#allocation6 + $0xf8] sm:$0xff]
    %v100 = vld [vmem:[#allocation6 + $0x100] sm:$0xff]
    %v101 = vld [vmem:[#allocation6 + $0x108] sm:$0xff]
    %v102 = vld [vmem:[#allocation6 + $0x110] sm:$0xff]
    %v103 = vld [vmem:[#allocation6 + $0x118] sm:$0xff]
    %v104 = vld [vmem:[#allocation6 + $0x120] sm:$0xff]
    %v105 = vld [vmem:[#allocation6 + $0x128] sm:$0xff]
    %v106 = vld [vmem:[#allocation6 + $0x130] sm:$0xff]
    %v107 = vld [vmem:[#allocation6 + $0x138] sm:$0xff]
    %v108 = vld [vmem:[#allocation6 + $0x140] sm:$0xff]
    %v109 = vld [vmem:[#allocation6 + $0x148] sm:$0xff]
    %v110 = vld [vmem:[#allocation6 + $0x150] sm:$0xff]
    %v111 = vld [vmem:[#allocation6 + $0x158] sm:$0xff]
    %v112 = vld [vmem:[#allocation6 + $0x160] sm:$0xff]
    %v113 = vld [vmem:[#allocation6 + $0x168] sm:$0xff]
    %v114 = vld [vmem:[#allocation6 + $0x170] sm:$0xff]
    %v115 = vld [vmem:[#allocation6 + $0x178] sm:$0xff]
    %v116 = vld [vmem:[#allocation6 + $0x180] sm:$0xff]
    %v117 = vld [vmem:[#allocation6 + $0x188] sm:$0xff]
    %v118 = vld [vmem:[#allocation6 + $0x190] sm:$0xff]
    %v119 = vld [vmem:[#allocation6 + $0x198] sm:$0xff]
    %v120 = vld [vmem:[#allocation6 + $0x1a0] sm:$0xff]
    %v121 = vld [vmem:[#allocation6 + $0x1a8] sm:$0xff]
    %v122 = vld [vmem:[#allocation6 + $0x1b0] sm:$0xff]
    %v123 = vld [vmem:[#allocation6 + $0x1b8] sm:$0xff]
    %v124 = vld [vmem:[#allocation6 + $0x1c0] sm:$0xff]
    %v125 = vld [vmem:[#allocation6 + $0x1c8] sm:$0xff]
    %v126 = vld [vmem:[#allocation6 + $0x1d0] sm:$0xff]
    %v127 = vld [vmem:[#allocation6 + $0x1d8] sm:$0xff]
    %v128 = vld [vmem:[#allocation6 + $0x1e0] sm:$0xff]
    %v129 = vld [vmem:[#allocation6 + $0x1e8] sm:$0xff]
    %v130 = vld [vmem:[#allocation6 + $0x1f0] sm:$0xff]
    %v131 = vld [vmem:[#allocation6 + $0x1f8] sm:$0xff]
    %v132 = vld [vmem:[#allocation8] sm:$0xff]
    %v133 = vld [vmem:[#allocation8 + $0x8] sm:$0xff]
    %v134 = vld [vmem:[#allocation8 + $0x10] sm:$0xff]
    %v135 = vld [vmem:[#allocation8 + $0x18] sm:$0xff]
    %v136 = vld [vmem:[#allocation8 + $0x20] sm:$0xff]
    %v137 = vld [vmem:[#allocation8 + $0x28] sm:$0xff]
    %v138 = vld [vmem:[#allocation8 + $0x30] sm:$0xff]
    %v139 = vld [vmem:[#allocation8 + $0x38] sm:$0xff]
    %v140 = vld [vmem:[#allocation8 + $0x40] sm:$0xff]
    %v141 = vld [vmem:[#allocation8 + $0x48] sm:$0xff]
    %v142 = vld [vmem:[#allocation8 + $0x50] sm:$0xff]
    %v143 = vld [vmem:[#allocation8 + $0x58] sm:$0xff]
    %v144 = vld [vmem:[#allocation8 + $0x60] sm:$0xff]
    %v145 = vld [vmem:[#allocation8 + $0x68] sm:$0xff]
    %v146 = vld [vmem:[#allocation8 + $0x70] sm:$0xff]
    %v147 = vld [vmem:[#allocation8 + $0x78] sm:$0xff]
    %v148 = vld [vmem:[#allocation8 + $0x80] sm:$0xff]
    %v149 = vld [vmem:[#allocation8 + $0x88] sm:$0xff]
    %v150 = vld [vmem:[#allocation8 + $0x90] sm:$0xff]
    %v151 = vld [vmem:[#allocation8 + $0x98] sm:$0xff]
    %v152 = vld [vmem:[#allocation8 + $0xa0] sm:$0xff]
    %v153 = vld [vmem:[#allocation8 + $0xa8] sm:$0xff]
    %v154 = vld [vmem:[#allocation8 + $0xb0] sm:$0xff]
    %v155 = vld [vmem:[#allocation8 + $0xb8] sm:$0xff]
    %v156 = vld [vmem:[#allocation8 + $0xc0] sm:$0xff]
    %v157 = vld [vmem:[#allocation8 + $0xc8] sm:$0xff]
    %v158 = vld [vmem:[#allocation8 + $0xd0] sm:$0xff]
    %v159 = vld [vmem:[#allocation8 + $0xd8] sm:$0xff]
    %v160 = vld [vmem:[#allocation8 + $0xe0] sm:$0xff]
    %v161 = vld [vmem:[#allocation8 + $0xe8] sm:$0xff]
    %v162 = vld [vmem:[#allocation8 + $0xf0] sm:$0xff]
    %v163 = vld [vmem:[#allocation8 + $0xf8] sm:$0xff]
    %v164 = vld [vmem:[#allocation8 + $0x100] sm:$0xff]
    %v165 = vld [vmem:[#allocation8 + $0x108] sm:$0xff]
    %v166 = vld [vmem:[#allocation8 + $0x110] sm:$0xff]
    %v167 = vld [vmem:[#allocation8 + $0x118] sm:$0xff]
    %v168 = vld [vmem:[#allocation8 + $0x120] sm:$0xff]
    %v169 = vld [vmem:[#allocation8 + $0x128] sm:$0xff]
    %v170 = vld [vmem:[#allocation8 + $0x130] sm:$0xff]
    %v171 = vld [vmem:[#allocation8 + $0x138] sm:$0xff]
    %v172 = vld [vmem:[#allocation8 + $0x140] sm:$0xff]
    %v173 = vld [vmem:[#allocation8 + $0x148] sm:$0xff]
    %v174 = vld [vmem:[#allocation8 + $0x150] sm:$0xff]
    %v175 = vld [vmem:[#allocation8 + $0x158] sm:$0xff]
    %v176 = vld [vmem:[#allocation8 + $0x160] sm:$0xff]
    %v177 = vld [vmem:[#allocation8 + $0x168] sm:$0xff]
    %v178 = vld [vmem:[#allocation8 + $0x170] sm:$0xff]
    %v179 = vld [vmem:[#allocation8 + $0x178] sm:$0xff]
    %v180 = vld [vmem:[#allocation8 + $0x180] sm:$0xff]
    %v181 = vld [vmem:[#allocation8 + $0x188] sm:$0xff]
    %v182 = vld [vmem:[#allocation8 + $0x190] sm:$0xff]
    %v183 = vld [vmem:[#allocation8 + $0x198] sm:$0xff]
    %v184 = vld [vmem:[#allocation8 + $0x1a0] sm:$0xff]
    %v185 = vld [vmem:[#allocation8 + $0x1a8] sm:$0xff]
    %v186 = vld [vmem:[#allocation8 + $0x1b0] sm:$0xff]
    %v187 = vld [vmem:[#allocation8 + $0x1b8] sm:$0xff]
    %v188 = vld [vmem:[#allocation8 + $0x1c0] sm:$0xff]
    %v189 = vld [vmem:[#allocation8 + $0x1c8] sm:$0xff]
    %v190 = vld [vmem:[#allocation8 + $0x1d0] sm:$0xff]
    %v191 = vld [vmem:[#allocation8 + $0x1d8] sm:$0xff]
    %v192 = vld [vmem:[#allocation8 + $0x1e0] sm:$0xff]
    %v193 = vld [vmem:[#allocation8 + $0x1e8] sm:$0xff]
    %v194 = vld [vmem:[#allocation8 + $0x1f0] sm:$0xff]
    %v195 = vld [vmem:[#allocation8 + $0x1f8] sm:$0xff]
    %v196 = vld [vmem:[%s2] sm:$0x3]
    %v198 = vlaneseq
    %v199 = vshrl.u32 %v198, 7
    %v200 = vsub.s32 0, %v199
    %v201 = vrot.slane %v196, %v200
    %v202 = vlaneseq
    %v203 = vshrl.u32 %v202, 7
    %v204 = vsub.s32 1, %v203
    %v205 = vrot.slane %v196, %v204
    %208 = vmatprep.subr.mxu0 %v69
    %209 = vmatpush1.msra.mxu0 %v68
    %210 = vmatprep.subr.mxu0 %v71
    %211 = vmatpush1.msra.mxu0 %v70
    %212 = vmatprep.subr.mxu0 %v73
    %213 = vmatpush1.msra.mxu0 %v72
    %214 = vmatprep.subr.mxu0 %v75
    %215 = vmatpush1.msra.mxu0 %v74
    %216 = vmatprep.subr.mxu0 %v77
    %217 = vmatpush1.msra.mxu0 %v76
    %218 = vmatprep.subr.mxu0 %v79
    %219 = vmatpush1.msra.mxu0 %v78
    %220 = vmatprep.subr.mxu0 %v81
    %221 = vmatpush1.msra.mxu0 %v80
    %222 = vmatprep.subr.mxu0 %v83
    %223 = vmatpush1.msra.mxu0 %v82
    %224 = vmatprep.subr.mxu0 %v85
    %225 = vmatpush1.msra.mxu0 %v84
    %226 = vmatprep.subr.mxu0 %v87
    %227 = vmatpush1.msra.mxu0 %v86
    %228 = vmatprep.subr.mxu0 %v89
    %229 = vmatpush1.msra.mxu0 %v88
    %230 = vmatprep.subr.mxu0 %v91
    %231 = vmatpush1.msra.mxu0 %v90
    %232 = vmatprep.subr.mxu0 %v93
    %233 = vmatpush1.msra.mxu0 %v92
    %234 = vmatprep.subr.mxu0 %v95
    %235 = vmatpush1.msra.mxu0 %v94
    %236 = vmatprep.subr.mxu0 %v97
    %237 = vmatpush1.msra.mxu0 %v96
    %238 = vmatprep.subr.mxu0 %v99
    %239 = vmatpush1.msra.mxu0 %v98
    %240 = vmatprep.subr.mxu0 %v101
    %241 = vmatpush1.msra.mxu0 %v100
    %242 = vmatprep.subr.mxu0 %v103
    %243 = vmatpush1.msra.mxu0 %v102
    %244 = vmatprep.subr.mxu0 %v105
    %245 = vmatpush1.msra.mxu0 %v104
    %246 = vmatprep.subr.mxu0 %v107
    %247 = vmatpush1.msra.mxu0 %v106
    %248 = vmatprep.subr.mxu0 %v109
    %249 = vmatpush1.msra.mxu0 %v108
    %250 = vmatprep.subr.mxu0 %v111
    %251 = vmatpush1.msra.mxu0 %v110
    %252 = vmatprep.subr.mxu0 %v113
    %253 = vmatpush1.msra.mxu0 %v112
    %254 = vmatprep.subr.mxu0 %v115
    %255 = vmatpush1.msra.mxu0 %v114
    %256 = vmatprep.subr.mxu0 %v117
    %257 = vmatpush1.msra.mxu0 %v116
    %258 = vmatprep.subr.mxu0 %v119
    %259 = vmatpush1.msra.mxu0 %v118
    %260 = vmatprep.subr.mxu0 %v121
    %261 = vmatpush1.msra.mxu0 %v120
    %262 = vmatprep.subr.mxu0 %v123
    %263 = vmatpush1.msra.mxu0 %v122
    %264 = vmatprep.subr.mxu0 %v125
    %265 = vmatpush1.msra.mxu0 %v124
    %266 = vmatprep.subr.mxu0 %v127
    %267 = vmatpush1.msra.mxu0 %v126
    %268 = vmatprep.subr.mxu0 %v129
    %269 = vmatpush1.msra.mxu0 %v128
    %270 = vmatprep.subr.mxu0 %v131
    %271 = vmatpush1.msra.mxu0 %v130
    %272 = vmatprep.mubr.f32.mxu0 %v67
    %273 = vmatmul.mubr.f32.gmra.mrb[0].mxu0 %v66
    %v274 = vpop.f32.mrb[0].mxu0
    %v275 = vadd.f32 %v201, %v274
    %v276 = vpop.f32.mrb[0].mxu0
    %v277 = vadd.f32 %v205, %v276
    %278 = vdwg.mxu0
    %v279 = vmax.f32 %v275, 0.0
    %v280 = vmax.f32 %v277, 0.0
    %v281 = vld [vmem:[#allocation2] sm:$0xff]
    %v282 = vld [vmem:[#allocation2 + $0x8] sm:$0xff]
    %283 = vmatprep.subr.mxu0 %v133
    %284 = vmatpush1.msra.mxu0 %v132
    %285 = vmatprep.subr.mxu0 %v135
    %286 = vmatpush1.msra.mxu0 %v134
    %287 = vmatprep.subr.mxu0 %v137
    %288 = vmatpush1.msra.mxu0 %v136
    %289 = vmatprep.subr.mxu0 %v139
    %290 = vmatpush1.msra.mxu0 %v138
    %291 = vmatprep.subr.mxu0 %v141
    %292 = vmatpush1.msra.mxu0 %v140
    %293 = vmatprep.subr.mxu0 %v143
    %294 = vmatpush1.msra.mxu0 %v142
    %295 = vmatprep.subr.mxu0 %v145
    %296 = vmatpush1.msra.mxu0 %v144
    %297 = vmatprep.subr.mxu0 %v147
    %298 = vmatpush1.msra.mxu0 %v146
    %299 = vmatprep.subr.mxu0 %v149
    %300 = vmatpush1.msra.mxu0 %v148
    %301 = vmatprep.subr.mxu0 %v151
    %302 = vmatpush1.msra.mxu0 %v150
    %303 = vmatprep.subr.mxu0 %v153
    %304 = vmatpush1.msra.mxu0 %v152
    %305 = vmatprep.subr.mxu0 %v155
    %306 = vmatpush1.msra.mxu0 %v154
    %307 = vmatprep.subr.mxu0 %v157
    %308 = vmatpush1.msra.mxu0 %v156
    %309 = vmatprep.subr.mxu0 %v159
    %310 = vmatpush1.msra.mxu0 %v158
    %311 = vmatprep.subr.mxu0 %v161
    %312 = vmatpush1.msra.mxu0 %v160
    %313 = vmatprep.subr.mxu0 %v163
    %314 = vmatpush1.msra.mxu0 %v162
    %315 = vmatprep.subr.mxu0 %v165
    %316 = vmatpush1.msra.mxu0 %v164
    %317 = vmatprep.subr.mxu0 %v167
    %318 = vmatpush1.msra.mxu0 %v166
    %319 = vmatprep.subr.mxu0 %v169
    %320 = vmatpush1.msra.mxu0 %v168
    %321 = vmatprep.subr.mxu0 %v171
    %322 = vmatpush1.msra.mxu0 %v170
    %323 = vmatprep.subr.mxu0 %v173
    %324 = vmatpush1.msra.mxu0 %v172
    %325 = vmatprep.subr.mxu0 %v175
    %326 = vmatpush1.msra.mxu0 %v174
    %327 = vmatprep.subr.mxu0 %v177
    %328 = vmatpush1.msra.mxu0 %v176
    %329 = vmatprep.subr.mxu0 %v179
    %330 = vmatpush1.msra.mxu0 %v178
    %331 = vmatprep.subr.mxu0 %v181
    %332 = vmatpush1.msra.mxu0 %v180
    %333 = vmatprep.subr.mxu0 %v183
    %334 = vmatpush1.msra.mxu0 %v182
    %335 = vmatprep.subr.mxu0 %v185
    %336 = vmatpush1.msra.mxu0 %v184
    %337 = vmatprep.subr.mxu0 %v187
    %338 = vmatpush1.msra.mxu0 %v186
    %339 = vmatprep.subr.mxu0 %v189
    %340 = vmatpush1.msra.mxu0 %v188
    %341 = vmatprep.subr.mxu0 %v191
    %342 = vmatpush1.msra.mxu0 %v190
    %343 = vmatprep.subr.mxu0 %v193
    %344 = vmatpush1.msra.mxu0 %v192
    %345 = vmatprep.subr.mxu0 %v195
    %346 = vmatpush1.msra.mxu0 %v194
    %347 = vmatprep.mubr.f32.mxu0 %v280
    %348 = vmatmul.mubr.f32.gmra.mrb[0].mxu0 %v279
    %v349 = vpop.f32.mrb[0].mxu0
    %v350 = vadd.f32 0.0, %v349
    %v351 = vpop.f32.mrb[0].mxu0
    %v352 = vadd.f32 0.0, %v351
    %353 = vdwg.mxu0
    %v354 = vadd.f32 %v281, %v350
    %v355 = vadd.f32 %v282, %v352
    %356 = vst [vmem:[#allocation2] sm:$0xff] %v354
    %357 = vst [vmem:[#allocation2 + $0x8] sm:$0xff] %v355
    // Predicated region
    $region38: #{tpu_custom_call.1} parent=1 // pred_check
      %p358 = pneg %p60
    $region39: #{tpu_custom_call.1} parent=1 // pred_check_branch
      %360 = sbr.rel (%p358) target = $region41
    $region40: #{tpu_custom_call.1} parent=1 // pred_region
      %v361 = vld [vmem:[#allocation2] sm:$0xff]
      %v362 = vld [vmem:[#allocation2 + $0x8] sm:$0xff]
      %v363 = vld [vmem:[%s4] sm:$0x3]
      %v365 = vlaneseq
      %v366 = vshrl.u32 %v365, 7
      %v367 = vsub.s32 0, %v366
      %v368 = vrot.slane %v363, %v367
      %v369 = vlaneseq
      %v370 = vshrl.u32 %v369, 7
      %v371 = vsub.s32 1, %v370
      %v372 = vrot.slane %v363, %v371
      %v375 = vadd.f32 %v361, %v368
      %v376 = vadd.f32 %v362, %v372
      %377 = vst [vmem:[#allocation9] sm:$0xff] %v375
      %378 = vst [vmem:[#allocation9 + $0x8] sm:$0xff] %v376
    $region41: #{tpu_custom_call.1} parent=1 // pred_fallthru
      _
    // Predicated region
    $region42: #{tpu_custom_call.1} parent=1 // pred_check
      _
    $region43: #{tpu_custom_call.1} parent=1 // pred_check_branch
      %380 = sbr.rel (0) target = $region45
    $region44: #{tpu_custom_call.1} parent=1 // pred_region
      %s382 = ssub.s32 256, 256
      %383 = vsyncadd [#allocation5], %s382
      %s385 = sshll.u32 [#allocation9], 4
      %s386 = int_to_ptr.vmem [resolvable:$true] %s385
      %388 = dma.vmem_to_hbm [thread:$0]  %s386, 256, %s5, [#allocation5]
    $region45: #{tpu_custom_call.1} parent=1 // pred_fallthru
      _
    // Predicated region
    $region46: #{tpu_custom_call.1} parent=1 // pred_check
      _
    $region47: #{tpu_custom_call.1} parent=1 // pred_check_branch
      %390 = sbr.rel (0) target = $region49
    $region48: #{tpu_custom_call.1} parent=1 // pred_region
      %391 = dma.done [#allocation5], 256
    $region49: #{tpu_custom_call.1} parent=1 // pred_fallthru
      _
    %392 = vsyncpa [#allocation4], 1
    %393 = vsyncpa [#allocation7], 1
    %394 = vsyncpa [#allocation5], 1

// kernel: tpu_custom_call.1
$region0: #{tpu_custom_call.1}
  #allocation0 [shape = 'u32[]', space=smem, size = 0x4, offset = 0x4, fixed_abs, tag = 'smem constant byte address 0x4 - core index']
  #allocation1 [shape = 'u32[144,128]{1,0:T(1,128)}', space=vmem, size = 0x12000, scoped, tag = 'internal scratch']
  #allocation2 [shape = 'f32[8,256]{1,0:T(8,128)}', space=vmem, size = 0x2000, scoped, tag = 'scratch operand']
  %s0 = inlined_call_operand.hbm [shape: f32[8,256], index: 0, kind: input, shape index: {}]
  %s1 = inlined_call_operand.hbm [shape: f32[256,256], index: 1, kind: input, shape index: {}]
  %s2 = inlined_call_operand.vmem [shape: f32[1,256], index: 2, kind: input, shape index: {}]
  %s3 = inlined_call_operand.hbm [shape: f32[256,256], index: 3, kind: input, shape index: {}]
  %s4 = inlined_call_operand.vmem [shape: f32[1,256], index: 4, kind: input, shape index: {}]
  %s5 = inlined_call_operand.hbm [shape: f32[8,256], index: 5, kind: output, shape index: {}]
  %s6 = sld [smem:[#allocation0]]
  $region50: #{tpu_custom_call.1} parent=0
    _
  %s8 = ssub.s32 1, %s6
  %s9 = scalar_select 0, %s8, %s6
  $region1: #{tpu_custom_call.1} parent=0
    #allocation3 [shape = 'u8[8192]{0}', space=vmem, size = 0x2000, scoped, tag = 'input window, operand 0, single buffered']
    #allocation4 [shape = 's32[1]{0}', space=sflag, size = 0x4, scoped, tag = 'scoped memory for tpu_custom_call.1']
    #allocation5 [shape = 's32[1]{0}', space=sflag, size = 0x4, scoped, tag = 'scoped memory for tpu_custom_call.1']
    #allocation6 [shape = 'u8[262144]{0}', space=vmem, size = 0x40000, scoped, tag = 'input window, operand 1, single buffered']
    #allocation7 [shape = 's32[1]{0}', space=sflag, size = 0x4, scoped, tag = 'scoped memory for tpu_custom_call.1']
    #allocation8 [shape = 'u8[262144]{0}', space=vmem, size = 0x40000, scoped, tag = 'input window, operand 3, single buffered']
    #allocation9 [shape = 'u8[8192]{0}', space=vmem, size = 0x2000, scoped, tag = 'output window, operand 0, single buffered']
    %10 = vsyncpa [#allocation4], 0
    %11 = vsyncpa [#allocation7], 0
    %12 = vsyncpa [#allocation5], 0
    // Predicated region
    $region2: #{tpu_custom_call.1} parent=1 // pred_check
      _
    $region3: #{tpu_custom_call.1} parent=1 // pred_check_branch
      %14 = sbr.rel (0) target = $region5
    $region4: #{tpu_custom_call.1} parent=1 // pred_region
      %s16 = ssub.s32 256, 256
      %17 = vsyncadd [#allocation4], %s16
      %s19 = sshll.u32 [#allocation3], 4
      %s20 = int_to_ptr.vmem [resolvable:$true] %s19
      %22 = dma.hbm_to_vmem [thread:$0]  %s0, 256, %s20, [#allocation4]
    $region5: #{tpu_custom_call.1} parent=1 // pred_fallthru
      _
    // Predicated region
    $region6: #{tpu_custom_call.1} parent=1 // pred_check
      _
    $region7: #{tpu_custom_call.1} parent=1 // pred_check_branch
      %24 = sbr.rel (0) target = $region9
    $region8: #{tpu_custom_call.1} parent=1 // pred_region
      %s26 = ssub.s32 8192, 8192
      %27 = vsyncadd [#allocation7], %s26
      %s28 = sshll.u32 [#allocation6], 4
      %s29 = int_to_ptr.vmem [resolvable:$true] %s28
      %34 = dma.hbm_to_vmem [thread:$0]  %s1, 8192, %s29, [#allocation7], 256, 256, 16
    $region9: #{tpu_custom_call.1} parent=1 // pred_fallthru
      _
    // Predicated region
    $region10: #{tpu_custom_call.1} parent=1 // pred_check
      _
    $region11: #{tpu_custom_call.1} parent=1 // pred_check_branch
      %36 = sbr.rel (0) target = $region13
    $region12: #{tpu_custom_call.1} parent=1 // pred_region
      _
    $region13: #{tpu_custom_call.1} parent=1 // pred_fallthru
      _
    // Predicated region
    $region14: #{tpu_custom_call.1} parent=1 // pred_check
      _
    $region15: #{tpu_custom_call.1} parent=1 // pred_check_branch
      %38 = sbr.rel (0) target = $region17
    $region16: #{tpu_custom_call.1} parent=1 // pred_region
      %s40 = ssub.s32 8192, 8192
      %41 = vsyncadd [#allocation7], %s40
      %s42 = sshll.u32 [#allocation8], 4
      %s43 = int_to_ptr.vmem [resolvable:$true] %s42
      %48 = dma.hbm_to_vmem [thread:$0]  %s3, 8192, %s43, [#allocation7], 256, 256, 16
    $region17: #{tpu_custom_call.1} parent=1 // pred_fallthru
      _
    // Predicated region
    $region18: #{tpu_custom_call.1} parent=1 // pred_check
      _
    $region19: #{tpu_custom_call.1} parent=1 // pred_check_branch
      %50 = sbr.rel (0) target = $region21
    $region20: #{tpu_custom_call.1} parent=1 // pred_region
      _
    $region21: #{tpu_custom_call.1} parent=1 // pred_fallthru
      _
    // Predicated region
    $region22: #{tpu_custom_call.1} parent=1 // pred_check
      _
    $region23: #{tpu_custom_call.1} parent=1 // pred_check_branch
      %52 = sbr.rel (0) target = $region25
    $region24: #{tpu_custom_call.1} parent=1 // pred_region
      %53 = dma.done [#allocation4], 256
    $region25: #{tpu_custom_call.1} parent=1 // pred_fallthru
      _
    // Predicated region
    $region26: #{tpu_custom_call.1} parent=1 // pred_check
      _
    $region27: #{tpu_custom_call.1} parent=1 // pred_check_branch
      %55 = sbr.rel (0) target = $region29
    $region28: #{tpu_custom_call.1} parent=1 // pred_region
      %56 = dma.done [#allocation7], 8192
    $region29: #{tpu_custom_call.1} parent=1 // pred_fallthru
      _
    // Predicated region
    $region30: #{tpu_custom_call.1} parent=1 // pred_check
      _
    $region31: #{tpu_custom_call.1} parent=1 // pred_check_branch
      %58 = sbr.rel (0) target = $region33
    $region32: #{tpu_custom_call.1} parent=1 // pred_region
      %59 = dma.done [#allocation7], 8192
    $region33: #{tpu_custom_call.1} parent=1 // pred_fallthru
      _
    %p60 = scmp.eq.s32.totalorder 0, 0
    // Predicated region
    $region34: #{tpu_custom_call.1} parent=1 // pred_check
      %p61 = pneg %p60
    $region35: #{tpu_custom_call.1} parent=1 // pred_check_branch
      %63 = sbr.rel (%p61) target = $region37
    $region36: #{tpu_custom_call.1} parent=1 // pred_region
      %64 = vst [vmem:[#allocation2] sm:$0xff] 0.0
      %65 = vst [vmem:[#allocation2 + $0x8] sm:$0xff] 0.0
    $region37: #{tpu_custom_call.1} parent=1 // pred_fallthru
      _
    %v66 = vld [vmem:[#allocation3] sm:$0xff]
    %v67 = vld [vmem:[#allocation3 + $0x8] sm:$0xff]
    %v68 = vld [vmem:[#allocation6] sm:$0xff]
    %v69 = vld [vmem:[#allocation6 + $0x8] sm:$0xff]
    %v70 = vld [vmem:[#allocation6 + $0x10] sm:$0xff]
    %v71 = vld [vmem:[#allocation6 + $0x18] sm:$0xff]
    %v72 = vld [vmem:[#allocation6 + $0x20] sm:$0xff]
    %v73 = vld [vmem:[#allocation6 + $0x28] sm:$0xff]
    %v74 = vld [vmem:[#allocation6 + $0x30] sm:$0xff]
    %v75 = vld [vmem:[#allocation6 + $0x38] sm:$0xff]
    %v76 = vld [vmem:[#allocation6 + $0x40] sm:$0xff]
    %v77 = vld [vmem:[#allocation6 + $0x48] sm:$0xff]
    %v78 = vld [vmem:[#allocation6 + $0x50] sm:$0xff]
    %v79 = vld [vmem:[#allocation6 + $0x58] sm:$0xff]
    %v80 = vld [vmem:[#allocation6 + $0x60] sm:$0xff]
    %v81 = vld [vmem:[#allocation6 + $0x68] sm:$0xff]
    %v82 = vld [vmem:[#allocation6 + $0x70] sm:$0xff]
    %v83 = vld [vmem:[#allocation6 + $0x78] sm:$0xff]
    %v84 = vld [vmem:[#allocation6 + $0x80] sm:$0xff]
    %v85 = vld [vmem:[#allocation6 + $0x88] sm:$0xff]
    %v86 = vld [vmem:[#allocation6 + $0x90] sm:$0xff]
    %v87 = vld [vmem:[#allocation6 + $0x98] sm:$0xff]
    %v88 = vld [vmem:[#allocation6 + $0xa0] sm:$0xff]
    %v89 = vld [vmem:[#allocation6 + $0xa8] sm:$0xff]
    %v90 = vld [vmem:[#allocation6 + $0xb0] sm:$0xff]
    %v91 = vld [vmem:[#allocation6 + $0xb8] sm:$0xff]
    %v92 = vld [vmem:[#allocation6 + $0xc0] sm:$0xff]
    %v93 = vld [vmem:[#allocation6 + $0xc8] sm:$0xff]
    %v94 = vld [vmem:[#allocation6 + $0xd0] sm:$0xff]
    %v95 = vld [vmem:[#allocation6 + $0xd8] sm:$0xff]
    %v96 = vld [vmem:[#allocation6 + $0xe0] sm:$0xff]
    %v97 = vld [vmem:[#allocation6 + $0xe8] sm:$0xff]
    %v98 = vld [vmem:[#allocation6 + $0xf0] sm:$0xff]
    %v99 = vld [vmem:[#allocation6 + $0xf8] sm:$0xff]
    %v100 = vld [vmem:[#allocation6 + $0x100] sm:$0xff]
    %v101 = vld [vmem:[#allocation6 + $0x108] sm:$0xff]
    %v102 = vld [vmem:[#allocation6 + $0x110] sm:$0xff]
    %v103 = vld [vmem:[#allocation6 + $0x118] sm:$0xff]
    %v104 = vld [vmem:[#allocation6 + $0x120] sm:$0xff]
    %v105 = vld [vmem:[#allocation6 + $0x128] sm:$0xff]
    %v106 = vld [vmem:[#allocation6 + $0x130] sm:$0xff]
    %v107 = vld [vmem:[#allocation6 + $0x138] sm:$0xff]
    %v108 = vld [vmem:[#allocation6 + $0x140] sm:$0xff]
    %v109 = vld [vmem:[#allocation6 + $0x148] sm:$0xff]
    %v110 = vld [vmem:[#allocation6 + $0x150] sm:$0xff]
    %v111 = vld [vmem:[#allocation6 + $0x158] sm:$0xff]
    %v112 = vld [vmem:[#allocation6 + $0x160] sm:$0xff]
    %v113 = vld [vmem:[#allocation6 + $0x168] sm:$0xff]
    %v114 = vld [vmem:[#allocation6 + $0x170] sm:$0xff]
    %v115 = vld [vmem:[#allocation6 + $0x178] sm:$0xff]
    %v116 = vld [vmem:[#allocation6 + $0x180] sm:$0xff]
    %v117 = vld [vmem:[#allocation6 + $0x188] sm:$0xff]
    %v118 = vld [vmem:[#allocation6 + $0x190] sm:$0xff]
    %v119 = vld [vmem:[#allocation6 + $0x198] sm:$0xff]
    %v120 = vld [vmem:[#allocation6 + $0x1a0] sm:$0xff]
    %v121 = vld [vmem:[#allocation6 + $0x1a8] sm:$0xff]
    %v122 = vld [vmem:[#allocation6 + $0x1b0] sm:$0xff]
    %v123 = vld [vmem:[#allocation6 + $0x1b8] sm:$0xff]
    %v124 = vld [vmem:[#allocation6 + $0x1c0] sm:$0xff]
    %v125 = vld [vmem:[#allocation6 + $0x1c8] sm:$0xff]
    %v126 = vld [vmem:[#allocation6 + $0x1d0] sm:$0xff]
    %v127 = vld [vmem:[#allocation6 + $0x1d8] sm:$0xff]
    %v128 = vld [vmem:[#allocation6 + $0x1e0] sm:$0xff]
    %v129 = vld [vmem:[#allocation6 + $0x1e8] sm:$0xff]
    %v130 = vld [vmem:[#allocation6 + $0x1f0] sm:$0xff]
    %v131 = vld [vmem:[#allocation6 + $0x1f8] sm:$0xff]
    %v132 = vld [vmem:[#allocation8] sm:$0xff]
    %v133 = vld [vmem:[#allocation8 + $0x8] sm:$0xff]
    %v134 = vld [vmem:[#allocation8 + $0x10] sm:$0xff]
    %v135 = vld [vmem:[#allocation8 + $0x18] sm:$0xff]
    %v136 = vld [vmem:[#allocation8 + $0x20] sm:$0xff]
    %v137 = vld [vmem:[#allocation8 + $0x28] sm:$0xff]
    %v138 = vld [vmem:[#allocation8 + $0x30] sm:$0xff]
    %v139 = vld [vmem:[#allocation8 + $0x38] sm:$0xff]
    %v140 = vld [vmem:[#allocation8 + $0x40] sm:$0xff]
    %v141 = vld [vmem:[#allocation8 + $0x48] sm:$0xff]
    %v142 = vld [vmem:[#allocation8 + $0x50] sm:$0xff]
    %v143 = vld [vmem:[#allocation8 + $0x58] sm:$0xff]
    %v144 = vld [vmem:[#allocation8 + $0x60] sm:$0xff]
    %v145 = vld [vmem:[#allocation8 + $0x68] sm:$0xff]
    %v146 = vld [vmem:[#allocation8 + $0x70] sm:$0xff]
    %v147 = vld [vmem:[#allocation8 + $0x78] sm:$0xff]
    %v148 = vld [vmem:[#allocation8 + $0x80] sm:$0xff]
    %v149 = vld [vmem:[#allocation8 + $0x88] sm:$0xff]
    %v150 = vld [vmem:[#allocation8 + $0x90] sm:$0xff]
    %v151 = vld [vmem:[#allocation8 + $0x98] sm:$0xff]
    %v152 = vld [vmem:[#allocation8 + $0xa0] sm:$0xff]
    %v153 = vld [vmem:[#allocation8 + $0xa8] sm:$0xff]
    %v154 = vld [vmem:[#allocation8 + $0xb0] sm:$0xff]
    %v155 = vld [vmem:[#allocation8 + $0xb8] sm:$0xff]
    %v156 = vld [vmem:[#allocation8 + $0xc0] sm:$0xff]
    %v157 = vld [vmem:[#allocation8 + $0xc8] sm:$0xff]
    %v158 = vld [vmem:[#allocation8 + $0xd0] sm:$0xff]
    %v159 = vld [vmem:[#allocation8 + $0xd8] sm:$0xff]
    %v160 = vld [vmem:[#allocation8 + $0xe0] sm:$0xff]
    %v161 = vld [vmem:[#allocation8 + $0xe8] sm:$0xff]
    %v162 = vld [vmem:[#allocation8 + $0xf0] sm:$0xff]
    %v163 = vld [vmem:[#allocation8 + $0xf8] sm:$0xff]
    %v164 = vld [vmem:[#allocation8 + $0x100] sm:$0xff]
    %v165 = vld [vmem:[#allocation8 + $0x108] sm:$0xff]
    %v166 = vld [vmem:[#allocation8 + $0x110] sm:$0xff]
    %v167 = vld [vmem:[#allocation8 + $0x118] sm:$0xff]
    %v168 = vld [vmem:[#allocation8 + $0x120] sm:$0xff]
    %v169 = vld [vmem:[#allocation8 + $0x128] sm:$0xff]
    %v170 = vld [vmem:[#allocation8 + $0x130] sm:$0xff]
    %v171 = vld [vmem:[#allocation8 + $0x138] sm:$0xff]
    %v172 = vld [vmem:[#allocation8 + $0x140] sm:$0xff]
    %v173 = vld [vmem:[#allocation8 + $0x148] sm:$0xff]
    %v174 = vld [vmem:[#allocation8 + $0x150] sm:$0xff]
    %v175 = vld [vmem:[#allocation8 + $0x158] sm:$0xff]
    %v176 = vld [vmem:[#allocation8 + $0x160] sm:$0xff]
    %v177 = vld [vmem:[#allocation8 + $0x168] sm:$0xff]
    %v178 = vld [vmem:[#allocation8 + $0x170] sm:$0xff]
    %v179 = vld [vmem:[#allocation8 + $0x178] sm:$0xff]
    %v180 = vld [vmem:[#allocation8 + $0x180] sm:$0xff]
    %v181 = vld [vmem:[#allocation8 + $0x188] sm:$0xff]
    %v182 = vld [vmem:[#allocation8 + $0x190] sm:$0xff]
    %v183 = vld [vmem:[#allocation8 + $0x198] sm:$0xff]
    %v184 = vld [vmem:[#allocation8 + $0x1a0] sm:$0xff]
    %v185 = vld [vmem:[#allocation8 + $0x1a8] sm:$0xff]
    %v186 = vld [vmem:[#allocation8 + $0x1b0] sm:$0xff]
    %v187 = vld [vmem:[#allocation8 + $0x1b8] sm:$0xff]
    %v188 = vld [vmem:[#allocation8 + $0x1c0] sm:$0xff]
    %v189 = vld [vmem:[#allocation8 + $0x1c8] sm:$0xff]
    %v190 = vld [vmem:[#allocation8 + $0x1d0] sm:$0xff]
    %v191 = vld [vmem:[#allocation8 + $0x1d8] sm:$0xff]
    %v192 = vld [vmem:[#allocation8 + $0x1e0] sm:$0xff]
    %v193 = vld [vmem:[#allocation8 + $0x1e8] sm:$0xff]
    %v194 = vld [vmem:[#allocation8 + $0x1f0] sm:$0xff]
    %v195 = vld [vmem:[#allocation8 + $0x1f8] sm:$0xff]
    %v196 = vld [vmem:[%s2] sm:$0x3]
    %v198 = vlaneseq
    %v199 = vshrl.u32 %v198, 7
    %v200 = vsub.s32 0, %v199
    %v201 = vrot.slane %v196, %v200
    %v202 = vlaneseq
    %v203 = vshrl.u32 %v202, 7
    %v204 = vsub.s32 1, %v203
    %v205 = vrot.slane %v196, %v204
    %208 = vmatprep.subr.mxu0 %v69
    %209 = vmatpush1.msra.mxu0 %v68
    %210 = vmatprep.subr.mxu0 %v71
    %211 = vmatpush1.msra.mxu0 %v70
    %212 = vmatprep.subr.mxu0 %v73
    %213 = vmatpush1.msra.mxu0 %v72
    %214 = vmatprep.subr.mxu0 %v75
    %215 = vmatpush1.msra.mxu0 %v74
    %216 = vmatprep.subr.mxu0 %v77
    %217 = vmatpush1.msra.mxu0 %v76
    %218 = vmatprep.subr.mxu0 %v79
    %219 = vmatpush1.msra.mxu0 %v78
    %220 = vmatprep.subr.mxu0 %v81
    %221 = vmatpush1.msra.mxu0 %v80
    %222 = vmatprep.subr.mxu0 %v83
    %223 = vmatpush1.msra.mxu0 %v82
    %224 = vmatprep.subr.mxu0 %v85
    %225 = vmatpush1.msra.mxu0 %v84
    %226 = vmatprep.subr.mxu0 %v87
    %227 = vmatpush1.msra.mxu0 %v86
    %228 = vmatprep.subr.mxu0 %v89
    %229 = vmatpush1.msra.mxu0 %v88
    %230 = vmatprep.subr.mxu0 %v91
    %231 = vmatpush1.msra.mxu0 %v90
    %232 = vmatprep.subr.mxu0 %v93
    %233 = vmatpush1.msra.mxu0 %v92
    %234 = vmatprep.subr.mxu0 %v95
    %235 = vmatpush1.msra.mxu0 %v94
    %236 = vmatprep.subr.mxu0 %v97
    %237 = vmatpush1.msra.mxu0 %v96
    %238 = vmatprep.subr.mxu0 %v99
    %239 = vmatpush1.msra.mxu0 %v98
    %240 = vmatprep.subr.mxu0 %v101
    %241 = vmatpush1.msra.mxu0 %v100
    %242 = vmatprep.subr.mxu0 %v103
    %243 = vmatpush1.msra.mxu0 %v102
    %244 = vmatprep.subr.mxu0 %v105
    %245 = vmatpush1.msra.mxu0 %v104
    %246 = vmatprep.subr.mxu0 %v107
    %247 = vmatpush1.msra.mxu0 %v106
    %248 = vmatprep.subr.mxu0 %v109
    %249 = vmatpush1.msra.mxu0 %v108
    %250 = vmatprep.subr.mxu0 %v111
    %251 = vmatpush1.msra.mxu0 %v110
    %252 = vmatprep.subr.mxu0 %v113
    %253 = vmatpush1.msra.mxu0 %v112
    %254 = vmatprep.subr.mxu0 %v115
    %255 = vmatpush1.msra.mxu0 %v114
    %256 = vmatprep.subr.mxu0 %v117
    %257 = vmatpush1.msra.mxu0 %v116
    %258 = vmatprep.subr.mxu0 %v119
    %259 = vmatpush1.msra.mxu0 %v118
    %260 = vmatprep.subr.mxu0 %v121
    %261 = vmatpush1.msra.mxu0 %v120
    %262 = vmatprep.subr.mxu0 %v123
    %263 = vmatpush1.msra.mxu0 %v122
    %264 = vmatprep.subr.mxu0 %v125
    %265 = vmatpush1.msra.mxu0 %v124
    %266 = vmatprep.subr.mxu0 %v127
    %267 = vmatpush1.msra.mxu0 %v126
    %268 = vmatprep.subr.mxu0 %v129
    %269 = vmatpush1.msra.mxu0 %v128
    %270 = vmatprep.subr.mxu0 %v131
    %271 = vmatpush1.msra.mxu0 %v130
    %272 = vmatprep.mubr.f32.mxu0 %v67
    %273 = vmatmul.mubr.f32.gmra.mrb[0].mxu0 %v66
    %v274 = vpop.f32.mrb[0].mxu0
    %v275 = vadd.f32 %v201, %v274
    %v276 = vpop.f32.mrb[0].mxu0
    %v277 = vadd.f32 %v205, %v276
    %278 = vdwg.mxu0
    %v279 = vmax.f32 %v275, 0.0
    %v280 = vmax.f32 %v277, 0.0
    %v281 = vld [vmem:[#allocation2] sm:$0xff]
    %v282 = vld [vmem:[#allocation2 + $0x8] sm:$0xff]
    %283 = vmatprep.subr.mxu0 %v133
    %284 = vmatpush1.msra.mxu0 %v132
    %285 = vmatprep.subr.mxu0 %v135
    %286 = vmatpush1.msra.mxu0 %v134
    %287 = vmatprep.subr.mxu0 %v137
    %288 = vmatpush1.msra.mxu0 %v136
    %289 = vmatprep.subr.mxu0 %v139
    %290 = vmatpush1.msra.mxu0 %v138
    %291 = vmatprep.subr.mxu0 %v141
    %292 = vmatpush1.msra.mxu0 %v140
    %293 = vmatprep.subr.mxu0 %v143
    %294 = vmatpush1.msra.mxu0 %v142
    %295 = vmatprep.subr.mxu0 %v145
    %296 = vmatpush1.msra.mxu0 %v144
    %297 = vmatprep.subr.mxu0 %v147
    %298 = vmatpush1.msra.mxu0 %v146
    %299 = vmatprep.subr.mxu0 %v149
    %300 = vmatpush1.msra.mxu0 %v148
    %301 = vmatprep.subr.mxu0 %v151
    %302 = vmatpush1.msra.mxu0 %v150
    %303 = vmatprep.subr.mxu0 %v153
    %304 = vmatpush1.msra.mxu0 %v152
    %305 = vmatprep.subr.mxu0 %v155
    %306 = vmatpush1.msra.mxu0 %v154
    %307 = vmatprep.subr.mxu0 %v157
    %308 = vmatpush1.msra.mxu0 %v156
    %309 = vmatprep.subr.mxu0 %v159
    %310 = vmatpush1.msra.mxu0 %v158
    %311 = vmatprep.subr.mxu0 %v161
    %312 = vmatpush1.msra.mxu0 %v160
    %313 = vmatprep.subr.mxu0 %v163
    %314 = vmatpush1.msra.mxu0 %v162
    %315 = vmatprep.subr.mxu0 %v165
    %316 = vmatpush1.msra.mxu0 %v164
    %317 = vmatprep.subr.mxu0 %v167
    %318 = vmatpush1.msra.mxu0 %v166
    %319 = vmatprep.subr.mxu0 %v169
    %320 = vmatpush1.msra.mxu0 %v168
    %321 = vmatprep.subr.mxu0 %v171
    %322 = vmatpush1.msra.mxu0 %v170
    %323 = vmatprep.subr.mxu0 %v173
    %324 = vmatpush1.msra.mxu0 %v172
    %325 = vmatprep.subr.mxu0 %v175
    %326 = vmatpush1.msra.mxu0 %v174
    %327 = vmatprep.subr.mxu0 %v177
    %328 = vmatpush1.msra.mxu0 %v176
    %329 = vmatprep.subr.mxu0 %v179
    %330 = vmatpush1.msra.mxu0 %v178
    %331 = vmatprep.subr.mxu0 %v181
    %332 = vmatpush1.msra.mxu0 %v180
    %333 = vmatprep.subr.mxu0 %v183
    %334 = vmatpush1.msra.mxu0 %v182
    %335 = vmatprep.subr.mxu0 %v185
    %336 = vmatpush1.msra.mxu0 %v184
    %337 = vmatprep.subr.mxu0 %v187
    %338 = vmatpush1.msra.mxu0 %v186
    %339 = vmatprep.subr.mxu0 %v189
    %340 = vmatpush1.msra.mxu0 %v188
    %341 = vmatprep.subr.mxu0 %v191
    %342 = vmatpush1.msra.mxu0 %v190
    %343 = vmatprep.subr.mxu0 %v193
    %344 = vmatpush1.msra.mxu0 %v192
    %345 = vmatprep.subr.mxu0 %v195
    %346 = vmatpush1.msra.mxu0 %v194
    %347 = vmatprep.mubr.f32.mxu0 %v280
    %348 = vmatmul.mubr.f32.gmra.mrb[0].mxu0 %v279
    %v349 = vpop.f32.mrb[0].mxu0
    %v350 = vadd.f32 0.0, %v349
    %v351 = vpop.f32.mrb[0].mxu0
    %v352 = vadd.f32 0.0, %v351
    %353 = vdwg.mxu0
    %v354 = vadd.f32 %v281, %v350
    %v355 = vadd.f32 %v282, %v352
    %356 = vst [vmem:[#allocation2] sm:$0xff] %v354
    %357 = vst [vmem:[#allocation2 + $0x8] sm:$0xff] %v355
    // Predicated region
    $region38: #{tpu_custom_call.1} parent=1 // pred_check
      %p358 = pneg %p60
    $region39: #{tpu_custom_call.1} parent=1 // pred_check_branch
      %360 = sbr.rel (%p358) target = $region41
    $region40: #{tpu_custom_call.1} parent=1 // pred_region
      %v361 = vld [vmem:[#allocation2] sm:$0xff]
      %v362 = vld [vmem:[#allocation2 + $0x8] sm:$0xff]
      %v363 = vld [vmem:[%s4] sm:$0x3]
      %v365 = vlaneseq
      %v366 = vshrl.u32 %v365, 7
      %v367 = vsub.s32 0, %v366
      %v368 = vrot.slane %v363, %v367
      %v369 = vlaneseq
      %v370 = vshrl.u32 %v369, 7
      %v371 = vsub.s32 1, %v370
      %v372 = vrot.slane %v363, %v371
      %v375 = vadd.f32 %v361, %v368
      %v376 = vadd.f32 %v362, %v372
      %377 = vst [vmem:[#allocation9] sm:$0xff] %v375
      %378 = vst [vmem:[#allocation9 + $0x8] sm:$0xff] %v376
    $region41: #{tpu_custom_call.1} parent=1 // pred_fallthru
      _
    // Predicated region
    $region42: #{tpu_custom_call.1} parent=1 // pred_check
      _
    $region43: #{tpu_custom_call.1} parent=1 // pred_check_branch
      %380 = sbr.rel (0) target = $region45
    $region44: #{tpu_custom_call.1} parent=1 // pred_region
      %s382 = ssub.s32 256, 256
      %383 = vsyncadd [#allocation5], %s382
      %s385 = sshll.u32 [#allocation9], 4
      %s386 = int_to_ptr.vmem [resolvable:$true] %s385
      %388 = dma.vmem_to_hbm [thread:$0]  %s386, 256, %s5, [#allocation5]
    $region45: #{tpu_custom_call.1} parent=1 // pred_fallthru
      _
    // Predicated region
    $region46: #{tpu_custom_call.1} parent=1 // pred_check
      _
    $region47: #{tpu_custom_call.1} parent=1 // pred_check_branch
      %390 = sbr.rel (0) target = $region49
    $region48: #{tpu_custom_call.1} parent=1 // pred_region
      %391 = dma.done [#allocation5], 256
    $region49: #{tpu_custom_call.1} parent=1 // pred_fallthru
      _
    %392 = vsyncpa [#allocation4], 1
    %393 = vsyncpa [#allocation7], 1
    %394 = vsyncpa [#allocation5], 1

</llo_original>
